<compile_context>
chip_gen: v6e
topology: v6e:2x2x1
jax: 0.10.0
libtpu: 0.0.40
codegen_flags: <defaults>
</compile_context>

<pallas_src>
import functools
import math

import jax
import jax.numpy as jnp
from jax.experimental import pallas as pl
from jax.experimental.pallas import tpu as pltpu

LANE = 128             # vreg lane width
SUBLANE = 8            # vreg sublane count (f32)
# 4096 rows * 128 lanes * 4 B = 2 MiB per input per block. Double-buffered for
# two inputs = 8 MiB -> safe under v5e's 16 MiB default scoped VMEM while
# large enough to stay DMA-bound (not step-overhead-bound) on v7x.
MAX_BLOCK_ROWS = 4096


def _psnr_sqsum_kernel(pred_ref, tgt_ref, sums_ref, acc_ref, *, bm, row_limit):
    """Grid = (batch blocks, reduction tiles).

    Emits per-sample, per-lane partial squared-error sums of shape (k, LANE).
    `bm` and `row_limit` are trace-time constants.
    """
    n = pl.program_id(1)
    nn = pl.num_programs(1)

    # Hot path: pure VPU. The (x*0.5 + 0.5) affine cancels in the difference;
    # its 0.25 factor is folded into the epilogue scale (plain JAX).
    d = pred_ref[...].astype(jnp.float32) - tgt_ref[...].astype(jnp.float32)
    dd = d * d                                             # (k, bm, LANE)

    if row_limit is not None:
        # Final row tile extends past the sample: zero the out-of-bounds rows
        # (their DMA'd contents are undefined). Handful of VPU ops, hidden
        # under the DMA; only emitted when rows % bm != 0.
        row_ids = jax.lax.broadcasted_iota(jnp.int32, dd.shape, 1) + n * bm
        dd = jnp.where(row_ids < row_limit, dd, 0.0)

    k = dd.shape[0]
    if bm % SUBLANE == 0:
        # Fold row groups of 8 into a vreg-shaped per-sample accumulator:
        # pure vreg adds, no cross-lane traffic in the hot loop.
        @pl.when(n == 0)
        def _():
            acc_ref[...] = jnp.zeros_like(acc_ref)

        acc_ref[...] += jnp.sum(
            dd.reshape(k, bm // SUBLANE, SUBLANE, LANE), axis=1)

        @pl.when(n == nn - 1)
        def _():
            # One cross-sublane reduce per sample, once per sample.
            sums_ref[...] = jnp.sum(acc_ref[...], axis=1)   # (k, LANE)
    else:
        # Only reachable in the packed single-tile regime (bm == rows == full
        # dim, rows not a multiple of 8): no cross-step accumulation needed.
        sums_ref[...] = jnp.sum(dd, axis=1)                 # (k, LANE)


def psnr_loss(output, target, max_val=1.0):
    """Negative PSNR loss, matching PyTorch PSNRLoss.forward semantics."""
    assert output.shape == target.shape
    B = output.shape[0]
    n_elems = math.prod(output.shape[1:])

    # View every sample as (rows, 128). Free (no-copy) reshape when n_elems is
    # lane aligned, which covers typical C*H*W image sizes.
    if n_elems % LANE == 0:
        rows = n_elems // LANE
        pred3 = output.reshape(B, rows, LANE)
        tgt3 = target.reshape(B, rows, LANE)
    else:
        # TODO(synk): replace this lane-tail pad (HBM copy) with an in-kernel
        # element mask for sample sizes that are not multiples of 128.
        rows = pl.cdiv(n_elems, LANE)
        pad = rows * LANE - n_elems
        pred3 = jnp.pad(output.reshape(B, n_elems), ((0, 0), (0, pad))).reshape(
            B, rows, LANE)
        tgt3 = jnp.pad(target.reshape(B, n_elems), ((0, 0), (0, pad))).reshape(
            B, rows, LANE)

    if rows <= MAX_BLOCK_ROWS:
        # Packed regime: whole sample fits in one row tile; pack k samples per
        # block so each grid step still moves ~MiB of data.
        bm = rows                      # == full dim, so any value is tile-legal
        n_tiles = 1
        k_cap = max(1, MAX_BLOCK_ROWS // max(rows, 1))
        if B <= k_cap:
            k = B                      # full batch dim -> always legal block dim
        elif k_cap >= SUBLANE:
            k = (k_cap // SUBLANE) * SUBLANE
        else:
            k = 1
        row_limit = None
    else:
        # Streaming regime: one sample per batch block, large row tiles.
        k = 1
        bm = MAX_BLOCK_ROWS            # multiple of 32 -> legal for f32/bf16/int8
        n_tiles = pl.cdiv(rows, bm)
        row_limit = rows if rows % bm != 0 else None

    grid = (pl.cdiv(B, k), n_tiles)

    kernel = functools.partial(_psnr_sqsum_kernel, bm=bm, row_limit=row_limit)

    # Per-sample, per-lane partial squared-error sums.
    lane_sums = pl.pallas_call(
        kernel,
        out_shape=jax.ShapeDtypeStruct((B, LANE), jnp.float32),
        grid_spec=pltpu.PrefetchScalarGridSpec(
            num_scalar_prefetch=0,
            grid=grid,
            in_specs=[
                pl.BlockSpec((k, bm, LANE), lambda b, n: (b, n, 0)),
                pl.BlockSpec((k, bm, LANE), lambda b, n: (b, n, 0)),
            ],
            out_specs=pl.BlockSpec((k, LANE), lambda b, n: (b, 0)),
            scratch_shapes=[
                pltpu.VMEM((k, SUBLANE, LANE), jnp.float32),
            ],
        ),
        compiler_params=pltpu.CompilerParams(
            dimension_semantics=("parallel", "arbitrary")),
    )(pred3, tgt3)

    # TODO(synk): for v7x with B == 1, add a leading "parallel" chunk axis over
    # the reduction range (per-chunk partial sums) so both TensorCores stream.

    # Tiny epilogue in plain JAX: lane reduce, PSNR math, batch mean.
    sq_sum = jnp.sum(lane_sums, axis=-1)                    # (B,)
    mse = sq_sum * jnp.float32(0.25 / n_elems)              # 0.25 from the 0.5 scale
    zero_mask = mse == 0.0
    mse_safe = jnp.where(zero_mask, jnp.float32(1e-8), mse)
    psnr = jnp.float32(20.0 * math.log10(float(max_val))) - 10.0 * jnp.log10(mse_safe)
    psnr = jnp.where(zero_mask, jnp.float32(100.0), psnr)
    return -jnp.mean(psnr)


def _psnr_loss_ref(output, target, max_val=1.0):
    o = output.astype(jnp.float32) * 0.5 + 0.5
    t = target.astype(jnp.float32) * 0.5 + 0.5
    mse = jnp.mean((o - t) ** 2, axis=tuple(range(1, output.ndim)))
    zero_mask = mse == 0
    mse = jnp.where(zero_mask, 1e-8, mse)
    psnr = 20.0 * jnp.log10(jnp.float32(max_val)) - 10.0 * jnp.log10(mse)
    psnr = jnp.where(zero_mask, 100.0, psnr)
    return -jnp.mean(psnr)


if __name__ == "__main__":
    key = jax.random.PRNGKey(0)
    k1, k2, k3, k4 = jax.random.split(key, 4)

    # Primary check (packed regime): small NCHW, tanh-normalized-like values.
    x_shape = (2, 4, 16, 16)
    output = jax.random.uniform(k1, x_shape, jnp.float32, minval=-1.0, maxval=1.0)
    target = jax.random.uniform(k2, x_shape, jnp.float32, minval=-1.0, maxval=1.0)
    loss = jax.block_until_ready(psnr_loss(output, target, max_val=1.0))
    ref = jax.block_until_ready(_psnr_loss_ref(output, target, max_val=1.0))
    assert jnp.allclose(loss, ref, rtol=1e-5, atol=1e-4), (loss, ref)

    # Secondary check (streaming regime with in-kernel row-tail mask).
    y_shape = (1, 3, 512, 512)
    out_b = jax.random.uniform(k3, y_shape, jnp.float32, minval=-1.0, maxval=1.0)
    tgt_b = jax.random.uniform(k4, y_shape, jnp.float32, minval=-1.0, maxval=1.0)
    loss_b = jax.block_until_ready(psnr_loss(out_b, tgt_b, max_val=1.0))
    ref_b = jax.block_until_ready(_psnr_loss_ref(out_b, tgt_b, max_val=1.0))
    assert jnp.allclose(loss_b, ref_b, rtol=1e-5, atol=1e-4), (loss_b, ref_b)

    print("KERNEL_OK")
</pallas_src>

<mosaic_0001>
module attributes {stable_mosaic.version = 11 : i64} {
  func.func @_psnr_sqsum_kernel(%arg0: i32, %arg1: i32, %arg2: memref<2x8x128xf32, #tpu.memory_space<vmem>>, %arg3: memref<2x8x128xf32, #tpu.memory_space<vmem>>, %arg4: memref<2x128xf32, #tpu.memory_space<vmem>>, %arg5: memref<2x8x128xf32, #tpu.memory_space<vmem>>) attributes {dimension_semantics = [#tpu.dimension_semantics<parallel>, #tpu.dimension_semantics<arbitrary>], iteration_bounds = array<i64: 1, 1>, scalar_prefetch = 0 : i64, scratch_operands = 1 : i64, tpu.core_type = #tpu.core_type<tc>, window_params = [{transform_indices = @transform_0, window_bounds = array<i64: 2, 8, 128>}, {transform_indices = @transform_1, window_bounds = array<i64: 2, 8, 128>}, {transform_indices = @transform_2, window_bounds = array<i64: 2, 128>}]} {
    %c0 = arith.constant 0 : index
    %c0_0 = arith.constant 0 : index
    %c0_1 = arith.constant 0 : index
    %0 = vector.load %arg2[%c0, %c0_0, %c0_1] : memref<2x8x128xf32, #tpu.memory_space<vmem>>, vector<2x8x128xf32>
    %c0_2 = arith.constant 0 : index
    %c0_3 = arith.constant 0 : index
    %c0_4 = arith.constant 0 : index
    %1 = vector.load %arg3[%c0_2, %c0_3, %c0_4] : memref<2x8x128xf32, #tpu.memory_space<vmem>>, vector<2x8x128xf32>
    %2 = arith.subf %0, %1 : vector<2x8x128xf32>
    %3 = arith.mulf %2, %2 : vector<2x8x128xf32>
    %c0_i32 = arith.constant 0 : i32
    %4 = arith.cmpi eq, %arg1, %c0_i32 : i32
    %5 = arith.extui %4 : i1 to i32
    %c0_i32_5 = arith.constant 0 : i32
    %6 = arith.cmpi ne, %5, %c0_i32_5 : i32
    scf.if %6 {
      %cst_14 = arith.constant 0.000000e+00 : f32
      %15 = vector.broadcast %cst_14 : f32 to vector<2x8x128xf32>
      %c0_15 = arith.constant 0 : index
      %c0_16 = arith.constant 0 : index
      %c0_17 = arith.constant 0 : index
      %16 = vector.load %arg5[%c0_15, %c0_16, %c0_17] : memref<2x8x128xf32, #tpu.memory_space<vmem>>, vector<2x8x128xf32>
      tpu.vector_store %arg5[%c0_15, %c0_16, %c0_17], %15 {strides = array<i32>} : memref<2x8x128xf32, #tpu.memory_space<vmem>>, vector<2x8x128xf32>,
    } else {
    }
    %c0_6 = arith.constant 0 : index
    %c0_7 = arith.constant 0 : index
    %c0_8 = arith.constant 0 : index
    %7 = vector.load %arg5[%c0_6, %c0_7, %c0_8] : memref<2x8x128xf32, #tpu.memory_space<vmem>>, vector<2x8x128xf32>
    %8 = vector.shape_cast %3 : vector<2x8x128xf32> to vector<2x1x8x128xf32>
    %cst = arith.constant dense<0.000000e+00> : vector<2x8x128xf32>
    %9 = vector.multi_reduction <add>, %8, %cst [1] : vector<2x1x8x128xf32> to vector<2x8x128xf32>
    %10 = arith.addf %7, %9 : vector<2x8x128xf32>
    %c0_9 = arith.constant 0 : index
    %c0_10 = arith.constant 0 : index
    %c0_11 = arith.constant 0 : index
    %11 = vector.load %arg5[%c0_9, %c0_10, %c0_11] : memref<2x8x128xf32, #tpu.memory_space<vmem>>, vector<2x8x128xf32>
    tpu.vector_store %arg5[%c0_9, %c0_10, %c0_11], %10 {strides = array<i32>} : memref<2x8x128xf32, #tpu.memory_space<vmem>>, vector<2x8x128xf32>,
    %c0_i32_12 = arith.constant 0 : i32
    %12 = arith.cmpi eq, %arg1, %c0_i32_12 : i32
    %13 = arith.extui %12 : i1 to i32
    %c0_i32_13 = arith.constant 0 : i32
    %14 = arith.cmpi ne, %13, %c0_i32_13 : i32
    scf.if %14 {
      %c0_14 = arith.constant 0 : index
      %c0_15 = arith.constant 0 : index
      %c0_16 = arith.constant 0 : index
      %15 = vector.load %arg5[%c0_14, %c0_15, %c0_16] : memref<2x8x128xf32, #tpu.memory_space<vmem>>, vector<2x8x128xf32>
      %cst_17 = arith.constant dense<0.000000e+00> : vector<2x128xf32>
      %16 = vector.multi_reduction <add>, %15, %cst_17 [1] : vector<2x8x128xf32> to vector<2x128xf32>
      %c0_18 = arith.constant 0 : index
      %c0_19 = arith.constant 0 : index
      %17 = vector.load %arg4[%c0_18, %c0_19] : memref<2x128xf32, #tpu.memory_space<vmem>>, vector<2x128xf32>
      tpu.vector_store %arg4[%c0_18, %c0_19], %16 {strides = array<i32>} : memref<2x128xf32, #tpu.memory_space<vmem>>, vector<2x128xf32>,
    } else {
    }
    return
  }
  func.func @transform_0(%arg0: i32, %arg1: i32) -> (i32, i32, i32) {
    %c0_i32 = arith.constant 0 : i32
    %c0_i32_0 = arith.constant 0 : i32
    return %arg0, %arg1, %c0_i32 : i32, i32, i32
  }
  func.func @transform_1(%arg0: i32, %arg1: i32) -> (i32, i32, i32) {
    %c0_i32 = arith.constant 0 : i32
    %c0_i32_0 = arith.constant 0 : i32
    return %arg0, %arg1, %c0_i32 : i32, i32, i32
  }
  func.func @transform_2(%arg0: i32, %arg1: i32) -> (i32, i32) {
    %c0_i32 = arith.constant 0 : i32
    %c0_i32_0 = arith.constant 0 : i32
    return %arg0, %c0_i32 : i32, i32
  }
}

</mosaic_0001>

<llo_original>
// kernel: tpu_custom_call.1
$region0: #{tpu_custom_call.1}
  #allocation0 [shape = 'u32[]', space=smem, size = 0x4, offset = 0x4, fixed_abs, tag = 'smem constant byte address 0x4 - core index']
  #allocation1 [shape = 'u32[144,128]{1,0:T(1,128)}', space=vmem, size = 0x12000, scoped, tag = 'internal scratch']
  #allocation2 [shape = 'f32[2,8,128]{2,1,0:T(8,128)}', space=vmem, size = 0x2000, scoped, tag = 'scratch operand']
  %s0 = inlined_call_operand.hbm [shape: f32[2,8,128], index: 0, kind: input, shape index: {}]
  %s1 = inlined_call_operand.hbm [shape: f32[2,8,128], index: 1, kind: input, shape index: {}]
  %s2 = inlined_call_operand.hbm [shape: f32[2,128], index: 2, kind: output, shape index: {}]
  %s3 = sld [smem:[#allocation0]]
  $region34: #{tpu_custom_call.1} parent=0
    _
  %s5 = ssub.s32 1, %s3
  %s6 = scalar_select 0, %s5, %s3
  $region1: #{tpu_custom_call.1} parent=0
    #allocation3 [shape = 'u8[8192]{0}', space=vmem, size = 0x2000, scoped, tag = 'input window, operand 0, single buffered']
    #allocation4 [shape = 's32[1]{0}', space=sflag, size = 0x4, scoped, tag = 'scoped memory for tpu_custom_call.1']
    #allocation5 [shape = 's32[1]{0}', space=sflag, size = 0x4, scoped, tag = 'scoped memory for tpu_custom_call.1']
    #allocation6 [shape = 'u8[8192]{0}', space=vmem, size = 0x2000, scoped, tag = 'input window, operand 1, single buffered']
    #allocation7 [shape = 's32[1]{0}', space=sflag, size = 0x4, scoped, tag = 'scoped memory for tpu_custom_call.1']
    #allocation8 [shape = 'u8[1024]{0}', space=vmem, size = 0x400, scoped, tag = 'output window, operand 0, single buffered']
    %7 = vsyncpa [#allocation4], 0
    %8 = vsyncpa [#allocation7], 0
    %9 = vsyncpa [#allocation5], 0
    // Predicated region
    $region2: #{tpu_custom_call.1} parent=1 // pred_check
      _
    $region3: #{tpu_custom_call.1} parent=1 // pred_check_branch
      %11 = sbr.rel (0) target = $region5
    $region4: #{tpu_custom_call.1} parent=1 // pred_region
      %s13 = ssub.s32 256, 256
      %14 = vsyncadd [#allocation4], %s13
      %s15 = sshll.u32 [#allocation3], 4
      %s16 = int_to_ptr.vmem [resolvable:$true] %s15
      %21 = dma.hbm_to_vmem [thread:$0]  %s0, 256, %s16, [#allocation4], 128, 128, 8
    $region5: #{tpu_custom_call.1} parent=1 // pred_fallthru
      _
    // Predicated region
    $region6: #{tpu_custom_call.1} parent=1 // pred_check
      _
    $region7: #{tpu_custom_call.1} parent=1 // pred_check_branch
      %23 = sbr.rel (0) target = $region9
    $region8: #{tpu_custom_call.1} parent=1 // pred_region
      %s25 = ssub.s32 256, 256
      %26 = vsyncadd [#allocation7], %s25
      %s27 = sshll.u32 [#allocation6], 4
      %s28 = int_to_ptr.vmem [resolvable:$true] %s27
      %33 = dma.hbm_to_vmem [thread:$0]  %s1, 256, %s28, [#allocation7], 128, 128, 8
    $region9: #{tpu_custom_call.1} parent=1 // pred_fallthru
      _
    // Predicated region
    $region10: #{tpu_custom_call.1} parent=1 // pred_check
      _
    $region11: #{tpu_custom_call.1} parent=1 // pred_check_branch
      %35 = sbr.rel (0) target = $region13
    $region12: #{tpu_custom_call.1} parent=1 // pred_region
      %36 = dma.done [#allocation4], 256
    $region13: #{tpu_custom_call.1} parent=1 // pred_fallthru
      _
    // Predicated region
    $region14: #{tpu_custom_call.1} parent=1 // pred_check
      _
    $region15: #{tpu_custom_call.1} parent=1 // pred_check_branch
      %38 = sbr.rel (0) target = $region17
    $region16: #{tpu_custom_call.1} parent=1 // pred_region
      %39 = dma.done [#allocation7], 256
    $region17: #{tpu_custom_call.1} parent=1 // pred_fallthru
      _
    %v40 = vld [vmem:[#allocation3] sm:$0xff]
    %v41 = vld [vmem:[#allocation3 + $0x8] sm:$0xff]
    %v42 = vld [vmem:[#allocation6] sm:$0xff]
    %v43 = vld [vmem:[#allocation6 + $0x8] sm:$0xff]
    %v44 = vsub.f32 %v40, %v42
    %v45 = vsub.f32 %v41, %v43
    %v46 = vmul.f32 %v44, %v44
    %v47 = vmul.f32 %v45, %v45
    %p48 = scmp.eq.s32.totalorder 0, 0
    // Predicated region
    $region18: #{tpu_custom_call.1} parent=1 // pred_check
      %p49 = pneg %p48
    $region19: #{tpu_custom_call.1} parent=1 // pred_check_branch
      %51 = sbr.rel (%p49) target = $region21
    $region20: #{tpu_custom_call.1} parent=1 // pred_region
      %52 = vst [vmem:[#allocation2] sm:$0xff] 0.0
      %53 = vst [vmem:[#allocation2 + $0x8] sm:$0xff] 0.0
    $region21: #{tpu_custom_call.1} parent=1 // pred_fallthru
      _
    %v54 = vld [vmem:[#allocation2] sm:$0xff]
    %v55 = vld [vmem:[#allocation2 + $0x8] sm:$0xff]
    %v56 = vadd.f32 %v46, 0.0
    %v57 = vadd.f32 %v47, 0.0
    %v58 = vadd.f32 %v54, %v56
    %v59 = vadd.f32 %v55, %v57
    %60 = vst [vmem:[#allocation2] sm:$0xff] %v58
    %61 = vst [vmem:[#allocation2 + $0x8] sm:$0xff] %v59
    // Predicated region
    $region22: #{tpu_custom_call.1} parent=1 // pred_check
      %p62 = pneg %p48
    $region23: #{tpu_custom_call.1} parent=1 // pred_check_branch
      %64 = sbr.rel (%p62) target = $region25
    $region24: #{tpu_custom_call.1} parent=1 // pred_region
      %v65 = vld [vmem:[#allocation2] sm:$0xff]
      %v66 = vld [vmem:[#allocation2 + $0x8] sm:$0xff]
      %v67 = vrot.slane %v65, 4
      %v68 = vadd.f32 %v65, %v67
      %v69 = vrot.slane %v68, 2
      %v70 = vadd.f32 %v68, %v69
      %v71 = vrot.slane %v70, 1
      %v72 = vadd.f32 %v70, %v71
      %v73 = vrot.slane %v66, 4
      %v74 = vadd.f32 %v66, %v73
      %v75 = vrot.slane %v74, 2
      %v76 = vadd.f32 %v74, %v75
      %v77 = vrot.slane %v76, 1
      %v78 = vadd.f32 %v76, %v77
      %vm81 = vcmask 1041409
      %v82 = vsel %vm81, %v78, %v72
      %84 = vst [vmem:[#allocation8] sm:$0x3] %v82
    $region25: #{tpu_custom_call.1} parent=1 // pred_fallthru
      _
    // Predicated region
    $region26: #{tpu_custom_call.1} parent=1 // pred_check
      _
    $region27: #{tpu_custom_call.1} parent=1 // pred_check_branch
      %86 = sbr.rel (0) target = $region29
    $region28: #{tpu_custom_call.1} parent=1 // pred_region
      %s88 = ssub.s32 32, 32
      %89 = vsyncadd [#allocation5], %s88
      %s91 = sshll.u32 [#allocation8], 4
      %s92 = int_to_ptr.vmem [resolvable:$true] %s91
      %94 = dma.vmem_to_hbm [thread:$0]  %s92, 32, %s2, [#allocation5]
    $region29: #{tpu_custom_call.1} parent=1 // pred_fallthru
      _
    // Predicated region
    $region30: #{tpu_custom_call.1} parent=1 // pred_check
      _
    $region31: #{tpu_custom_call.1} parent=1 // pred_check_branch
      %96 = sbr.rel (0) target = $region33
    $region32: #{tpu_custom_call.1} parent=1 // pred_region
      %97 = dma.done [#allocation5], 32
    $region33: #{tpu_custom_call.1} parent=1 // pred_fallthru
      _
    %98 = vsyncpa [#allocation4], 1
    %99 = vsyncpa [#allocation7], 1
    %100 = vsyncpa [#allocation5], 1

</llo_original>
